<compile_context>
chip_gen: v6e
topology: v6e:2x2x1
jax: 0.10.0
libtpu: 0.0.40
codegen_flags: <defaults>
</compile_context>

<pallas_src>
import functools

import jax
import jax.numpy as jnp
from jax.experimental import pallas as pl
from jax.experimental.pallas import tpu as pltpu

LANE = 128  # TPU lane width; channels are padded to a multiple of this.


def _round_up(x, m):
    return (x + m - 1) // m * m


# ----------------------------------------------------------------------------
# Pallas kernel
# ----------------------------------------------------------------------------
def _fused_causal_conv(x2, w_ref, b_ref, *, seq_len, dilation, ksize):
    """Fused (im2col) causal dilated conv.

    x2:    (Bt*L, C) f32, batch-major rows (L rows per batch element).
    w_ref: (K*C, Cout) bf16, tap-major rows (row index = k*C + c).
    b_ref: (1, Cout) f32.
    Returns (Bt*L, Cout) f32.
    """
    m, c = x2.shape
    need_mask = ksize > 1 and dilation > 0
    if need_mask:
        # Time-within-batch row index, hoisted once per conv (NOT per tap).
        bt = m // seq_len
        row_idx = jax.lax.broadcasted_iota(
            jnp.int32, (bt, seq_len, c), 1).reshape(m, c)

    taps = []
    for k in range(ksize):
        shift = (ksize - 1 - k) * dilation  # causal left zero padding (K-1-k)*d
        if shift == 0:
            taps.append(x2)
        else:
            rolled = pltpu.roll(x2, shift=shift, axis=0)
            # Rows whose within-batch time index < shift would contain wrapped
            # data (previous batch element / end of sequence) -> zero them,
            # which is exactly the causal zero padding.
            taps.append(jnp.where(row_idx < shift, 0.0, rolled))

    t = taps[0] if ksize == 1 else jnp.concatenate(taps, axis=-1)  # (M, K*C)
    t = t.astype(jnp.bfloat16)  # bf16 MXU inputs, f32 accumulation below
    out = jnp.dot(t, w_ref[...], preferred_element_type=jnp.float32)
    return out + b_ref[...]


def temporal_block_kernel(x_ref, w1_ref, b1_ref, w2_ref, b2_ref, *rest,
                          dilation, ksize, has_downsample):
    if has_downsample:
        wd_ref, bd_ref, o_ref = rest
    else:
        (o_ref,) = rest

    bt, L, cinp = x_ref.shape
    coutp = o_ref.shape[-1]
    m = bt * L

    x2 = x_ref[...].reshape(m, cinp)  # (Bt*L, CinP) f32

    h1 = jnp.maximum(
        _fused_causal_conv(x2, w1_ref, b1_ref,
                           seq_len=L, dilation=dilation, ksize=ksize), 0.0)
    h2 = jnp.maximum(
        _fused_causal_conv(h1, w2_ref, b2_ref,
                           seq_len=L, dilation=dilation, ksize=ksize), 0.0)

    if has_downsample:
        res = jnp.dot(x2.astype(jnp.bfloat16), wd_ref[...],
                      preferred_element_type=jnp.float32) + bd_ref[...]
    else:
        res = x2

    o_ref[...] = jnp.maximum(h2 + res, 0.0).reshape(bt, L, coutp)


# ----------------------------------------------------------------------------
# Wrappers (glue)
# ----------------------------------------------------------------------------
def _pick_batch_tile(n, l):
    """Batch elements per grid step so each step has >= ~256 matmul rows."""
    bt = min(n, max(1, -(-256 // l)))
    while n % bt:
        bt -= 1
    return bt


def temporal_block(x_nlc, raw_p, *, dilation, ksize):
    """One TemporalBlock on channel-padded activations.

    x_nlc: (N, L, CinP) f32 with CinP % 128 == 0  ->  (N, L, CoutP) f32.
    raw_p: unpadded f32 params (PyTorch-equivalent shapes).
    """
    N, L, cinp = x_nlc.shape
    _, cin, cout = raw_p["w1"].shape
    coutp = _round_up(cout, LANE)
    has_ds = "wd" in raw_p

    def pad_w(w, ci_p, co_p):  # (K, ci, co) -> (K*ci_p, co_p) bf16, tap-major
        k, ci, co = w.shape
        w = jnp.pad(w, ((0, 0), (0, ci_p - ci), (0, co_p - co)))
        return w.reshape(k * ci_p, co_p).astype(jnp.bfloat16)

    def pad_b(b, co_p):  # (1, co) -> (1, co_p) f32
        return jnp.pad(b, ((0, 0), (0, co_p - b.shape[1]))).astype(jnp.float32)

    w1 = pad_w(raw_p["w1"], cinp, coutp)
    b1 = pad_b(raw_p["b1"], coutp)
    w2 = pad_w(raw_p["w2"], coutp, coutp)
    b2 = pad_b(raw_p["b2"], coutp)

    bt = _pick_batch_tile(N, L)
    grid = (N // bt,)

    inputs = [x_nlc, w1, b1, w2, b2]
    in_specs = [
        pl.BlockSpec((bt, L, cinp), lambda n: (n, 0, 0)),
        pl.BlockSpec((ksize * cinp, coutp), lambda n: (0, 0)),
        pl.BlockSpec((1, coutp), lambda n: (0, 0)),
        pl.BlockSpec((ksize * coutp, coutp), lambda n: (0, 0)),
        pl.BlockSpec((1, coutp), lambda n: (0, 0)),
    ]
    if has_ds:
        wd = jnp.pad(raw_p["wd"],
                     ((0, cinp - cin), (0, coutp - cout))).astype(jnp.bfloat16)
        bd = pad_b(raw_p["bd"], coutp)
        inputs += [wd, bd]
        in_specs += [pl.BlockSpec((cinp, coutp), lambda n: (0, 0)),
                     pl.BlockSpec((1, coutp), lambda n: (0, 0))]

    kern = functools.partial(temporal_block_kernel, dilation=dilation,
                             ksize=ksize, has_downsample=has_ds)

    # Advisory cost estimate so XLA schedules around the per-layer calls.
    flops = 2 * N * L * coutp * (ksize * cinp + ksize * coutp
                                 + (cinp if has_ds else 0))
    bytes_accessed = (4 * N * L * (cinp + coutp)
                      + 2 * (int(w1.size) + int(w2.size))
                      + 4 * (int(b1.size) + int(b2.size)))
    if has_ds:
        bytes_accessed += 2 * int(wd.size) + 4 * int(bd.size)
    cost = pl.CostEstimate(flops=int(flops), transcendentals=0,
                           bytes_accessed=int(bytes_accessed))

    # TODO(synk): for long sequences, add an L-tiling grid axis with a
    # (K-1)*dilation causal halo and an explicit vmem_limit_bytes budget
    # (64 MiB VMEM on v7x); whole-L blocks are fine at these shapes.
    return pl.pallas_call(
        kern,
        out_shape=jax.ShapeDtypeStruct((N, L, coutp), jnp.float32),
        grid=grid,
        in_specs=in_specs,
        out_specs=pl.BlockSpec((bt, L, coutp), lambda n: (n, 0, 0)),
        compiler_params=pltpu.CompilerParams(
            dimension_semantics=("parallel",)),
        cost_estimate=cost,
    )(*inputs)


def temporal_conv_net(x_ncl, params, *, kernel_size):
    """Full TemporalConvNet.  x_ncl: (N, C, L) (PyTorch layout)."""
    N, C, L = x_ncl.shape
    x = jnp.transpose(x_ncl, (0, 2, 1))                         # -> (N, L, C)
    x = jnp.pad(x, ((0, 0), (0, 0), (0, _round_up(C, LANE) - C)))  # lane-dense
    for i, p in enumerate(params):
        x = temporal_block(x, p, dilation=2 ** i, ksize=kernel_size)
    c_last = params[-1]["w1"].shape[2]
    return jnp.transpose(x[:, :, :c_last], (0, 2, 1))            # -> (N, C, L)


def init_params(key, num_inputs, num_channels, kernel_size):
    """Deterministic synthetic parameters (shapes match the PyTorch module)."""
    params = []
    for i, cout in enumerate(num_channels):
        cin = num_inputs if i == 0 else num_channels[i - 1]
        key, k1, k2, k3, k4, k5, k6 = jax.random.split(key, 7)
        p = {
            # PyTorch Conv2d weight is (Cout, Cin, 1, K); stored as (K, Cin, Cout).
            "w1": 0.1 * jax.random.normal(k1, (kernel_size, cin, cout), jnp.float32),
            "b1": 0.1 * jax.random.normal(k2, (1, cout), jnp.float32),
            "w2": 0.1 * jax.random.normal(k3, (kernel_size, cout, cout), jnp.float32),
            "b2": 0.1 * jax.random.normal(k4, (1, cout), jnp.float32),
        }
        if cin != cout:
            # PyTorch Conv1d weight (Cout, Cin, 1) stored as (Cin, Cout).
            p["wd"] = 0.1 * jax.random.normal(k5, (cin, cout), jnp.float32)
            p["bd"] = 0.1 * jax.random.normal(k6, (1, cout), jnp.float32)
        params.append(p)
    return params


# ----------------------------------------------------------------------------
# Pure-JAX reference (lax.conv, f32) for a correctness check
# ----------------------------------------------------------------------------
def _ref_block(x_ncl, p, *, dilation, ksize):
    pad = (ksize - 1) * dilation

    def conv(inp, w_kio, b):
        rhs = jnp.transpose(w_kio, (2, 1, 0))  # (K, Cin, Cout) -> OIH
        out = jax.lax.conv_general_dilated(
            inp, rhs, window_strides=(1,), padding=[(pad, 0)],
            rhs_dilation=(dilation,), dimension_numbers=("NCH", "OIH", "NCH"))
        return out + b.reshape(1, -1, 1)

    h1 = jax.nn.relu(conv(x_ncl, p["w1"], p["b1"]))
    h2 = jax.nn.relu(conv(h1, p["w2"], p["b2"]))
    if "wd" in p:
        res = jnp.einsum("ncl,co->nol", x_ncl, p["wd"]) + p["bd"].reshape(1, -1, 1)
    else:
        res = x_ncl
    return jax.nn.relu(h2 + res)


def _ref_tcn(x_ncl, params, *, kernel_size):
    x = x_ncl
    for i, p in enumerate(params):
        x = _ref_block(x, p, dilation=2 ** i, ksize=kernel_size)
    return x


# ----------------------------------------------------------------------------
if __name__ == "__main__":
    key = jax.random.PRNGKey(0)
    kx, kp = jax.random.split(key)

    N, num_inputs, L = 2, 4, 16
    num_channels = (8, 8)
    kernel_size = 2

    x = jax.random.normal(kx, (N, num_inputs, L), jnp.float32)  # PyTorch (N, C, L)
    params = init_params(kp, num_inputs, num_channels, kernel_size)

    fwd = jax.jit(functools.partial(temporal_conv_net, kernel_size=kernel_size))
    out = jax.block_until_ready(fwd(x, params))

    ref = _ref_tcn(x, params, kernel_size=kernel_size)
    assert out.shape == (N, num_channels[-1], L), out.shape
    # bf16 matmul inputs (f32 accumulation) vs the pure-f32 reference.
    assert jnp.allclose(out, ref, rtol=3e-2, atol=3e-2), \
        float(jnp.max(jnp.abs(out - ref)))

    print("KERNEL_OK")
</pallas_src>

<mosaic_0001>
module attributes {stable_mosaic.version = 11 : i64} {
  func.func @temporal_block_kernel(%arg0: i32, %arg1: memref<2x16x128xf32, #tpu.memory_space<vmem>>, %arg2: memref<256x128xbf16, #tpu.memory_space<vmem>>, %arg3: memref<1x128xf32, #tpu.memory_space<vmem>>, %arg4: memref<256x128xbf16, #tpu.memory_space<vmem>>, %arg5: memref<1x128xf32, #tpu.memory_space<vmem>>, %arg6: memref<128x128xbf16, #tpu.memory_space<vmem>>, %arg7: memref<1x128xf32, #tpu.memory_space<vmem>>, %arg8: memref<2x16x128xf32, #tpu.memory_space<vmem>>) attributes {dimension_semantics = [#tpu.dimension_semantics<parallel>], iteration_bounds = array<i64: 1>, scalar_prefetch = 0 : i64, scratch_operands = 0 : i64, tpu.core_type = #tpu.core_type<tc>, window_params = [{transform_indices = @transform_0, window_bounds = array<i64: 2, 16, 128>}, {pipeline_mode = #tpu.pipeline_mode<synchronous>, transform_indices = @transform_1, window_bounds = array<i64: 256, 128>}, {pipeline_mode = #tpu.pipeline_mode<synchronous>, transform_indices = @transform_2, window_bounds = array<i64: 1, 128>}, {pipeline_mode = #tpu.pipeline_mode<synchronous>, transform_indices = @transform_3, window_bounds = array<i64: 256, 128>}, {pipeline_mode = #tpu.pipeline_mode<synchronous>, transform_indices = @transform_4, window_bounds = array<i64: 1, 128>}, {pipeline_mode = #tpu.pipeline_mode<synchronous>, transform_indices = @transform_5, window_bounds = array<i64: 128, 128>}, {pipeline_mode = #tpu.pipeline_mode<synchronous>, transform_indices = @transform_6, window_bounds = array<i64: 1, 128>}, {transform_indices = @transform_7, window_bounds = array<i64: 2, 16, 128>}]} {
    %c0 = arith.constant 0 : index
    %c0_0 = arith.constant 0 : index
    %c0_1 = arith.constant 0 : index
    %0 = vector.load %arg1[%c0, %c0_0, %c0_1] : memref<2x16x128xf32, #tpu.memory_space<vmem>>, vector<2x16x128xf32>
    %1 = vector.shape_cast %0 : vector<2x16x128xf32> to vector<32x128xf32>
    %2 = tpu.iota {dimensions = array<i32: 1>} : vector<2x16x128xi32>
    %3 = vector.shape_cast %2 : vector<2x16x128xi32> to vector<32x128xi32>
    %c1_i32 = arith.constant 1 : i32
    %4 = tpu.dynamic_rotate %1 by %c1_i32 dim 0 : vector<32x128xf32>, i32 -> vector<32x128xf32>
    %c1_i32_2 = arith.constant 1 : i32
    %5 = vector.broadcast %c1_i32_2 : i32 to vector<32x128xi32>
    %6 = arith.cmpi slt, %3, %5 : vector<32x128xi32>
    %cst = arith.constant 0.000000e+00 : f32
    %7 = vector.broadcast %cst : f32 to vector<32x128xf32>
    %8 = arith.select %6, %7, %4 : vector<32x128xi1>, vector<32x128xf32>
    %9 = tpu.concatenate %8, %1 in 1 : vector<32x128xf32>, vector<32x128xf32> -> vector<32x256xf32>
    %10 = arith.truncf %9 : vector<32x256xf32> to vector<32x256xbf16>
    %c0_3 = arith.constant 0 : index
    %c0_4 = arith.constant 0 : index
    %11 = vector.load %arg2[%c0_3, %c0_4] : memref<256x128xbf16, #tpu.memory_space<vmem>>, vector<256x128xbf16>
    %cst_5 = arith.constant dense<0.000000e+00> : vector<32x128xf32>
    %12 = tpu.matmul %10, %11, %cst_5 {dimension_numbers = #tpu.dot_dimension_numbers<[1], [0], [0], [1], [0, 0, 1, 1], [], []>} : vector<32x256xbf16>, vector<256x128xbf16>, vector<32x128xf32> -> vector<32x128xf32>
    %c0_6 = arith.constant 0 : index
    %c0_7 = arith.constant 0 : index
    %13 = vector.load %arg3[%c0_6, %c0_7] : memref<1x128xf32, #tpu.memory_space<vmem>>, vector<1x128xf32>
    %14 = vector.broadcast %13 : vector<1x128xf32> to vector<32x128xf32>
    %15 = arith.addf %12, %14 : vector<32x128xf32>
    %cst_8 = arith.constant 0.000000e+00 : f32
    %16 = vector.broadcast %cst_8 : f32 to vector<32x128xf32>
    %17 = arith.maximumf %15, %16 : vector<32x128xf32>
    %18 = tpu.iota {dimensions = array<i32: 1>} : vector<2x16x128xi32>
    %19 = vector.shape_cast %18 : vector<2x16x128xi32> to vector<32x128xi32>
    %c1_i32_9 = arith.constant 1 : i32
    %20 = tpu.dynamic_rotate %17 by %c1_i32_9 dim 0 : vector<32x128xf32>, i32 -> vector<32x128xf32>
    %c1_i32_10 = arith.constant 1 : i32
    %21 = vector.broadcast %c1_i32_10 : i32 to vector<32x128xi32>
    %22 = arith.cmpi slt, %19, %21 : vector<32x128xi32>
    %cst_11 = arith.constant 0.000000e+00 : f32
    %23 = vector.broadcast %cst_11 : f32 to vector<32x128xf32>
    %24 = arith.select %22, %23, %20 : vector<32x128xi1>, vector<32x128xf32>
    %25 = tpu.concatenate %24, %17 in 1 : vector<32x128xf32>, vector<32x128xf32> -> vector<32x256xf32>
    %26 = arith.truncf %25 : vector<32x256xf32> to vector<32x256xbf16>
    %c0_12 = arith.constant 0 : index
    %c0_13 = arith.constant 0 : index
    %27 = vector.load %arg4[%c0_12, %c0_13] : memref<256x128xbf16, #tpu.memory_space<vmem>>, vector<256x128xbf16>
    %cst_14 = arith.constant dense<0.000000e+00> : vector<32x128xf32>
    %28 = tpu.matmul %26, %27, %cst_14 {dimension_numbers = #tpu.dot_dimension_numbers<[1], [0], [0], [1], [0, 0, 1, 1], [], []>} : vector<32x256xbf16>, vector<256x128xbf16>, vector<32x128xf32> -> vector<32x128xf32>
    %c0_15 = arith.constant 0 : index
    %c0_16 = arith.constant 0 : index
    %29 = vector.load %arg5[%c0_15, %c0_16] : memref<1x128xf32, #tpu.memory_space<vmem>>, vector<1x128xf32>
    %30 = vector.broadcast %29 : vector<1x128xf32> to vector<32x128xf32>
    %31 = arith.addf %28, %30 : vector<32x128xf32>
    %cst_17 = arith.constant 0.000000e+00 : f32
    %32 = vector.broadcast %cst_17 : f32 to vector<32x128xf32>
    %33 = arith.maximumf %31, %32 : vector<32x128xf32>
    %34 = arith.truncf %1 : vector<32x128xf32> to vector<32x128xbf16>
    %c0_18 = arith.constant 0 : index
    %c0_19 = arith.constant 0 : index
    %35 = vector.load %arg6[%c0_18, %c0_19] : memref<128x128xbf16, #tpu.memory_space<vmem>>, vector<128x128xbf16>
    %cst_20 = arith.constant dense<0.000000e+00> : vector<32x128xf32>
    %36 = tpu.matmul %34, %35, %cst_20 {dimension_numbers = #tpu.dot_dimension_numbers<[1], [0], [0], [1], [0, 0, 1, 1], [], []>} : vector<32x128xbf16>, vector<128x128xbf16>, vector<32x128xf32> -> vector<32x128xf32>
    %c0_21 = arith.constant 0 : index
    %c0_22 = arith.constant 0 : index
    %37 = vector.load %arg7[%c0_21, %c0_22] : memref<1x128xf32, #tpu.memory_space<vmem>>, vector<1x128xf32>
    %38 = vector.broadcast %37 : vector<1x128xf32> to vector<32x128xf32>
    %39 = arith.addf %36, %38 : vector<32x128xf32>
    %40 = arith.addf %33, %39 : vector<32x128xf32>
    %cst_23 = arith.constant 0.000000e+00 : f32
    %41 = vector.broadcast %cst_23 : f32 to vector<32x128xf32>
    %42 = arith.maximumf %40, %41 : vector<32x128xf32>
    %43 = vector.shape_cast %42 : vector<32x128xf32> to vector<2x16x128xf32>
    %c0_24 = arith.constant 0 : index
    %c0_25 = arith.constant 0 : index
    %c0_26 = arith.constant 0 : index
    %44 = vector.load %arg8[%c0_24, %c0_25, %c0_26] : memref<2x16x128xf32, #tpu.memory_space<vmem>>, vector<2x16x128xf32>
    tpu.vector_store %arg8[%c0_24, %c0_25, %c0_26], %43 {strides = array<i32>} : memref<2x16x128xf32, #tpu.memory_space<vmem>>, vector<2x16x128xf32>,
    return
  }
  func.func @transform_0(%arg0: i32) -> (i32, i32, i32) {
    %c0_i32 = arith.constant 0 : i32
    %c0_i32_0 = arith.constant 0 : i32
    %c0_i32_1 = arith.constant 0 : i32
    return %arg0, %c0_i32, %c0_i32_0 : i32, i32, i32
  }
  func.func @transform_1(%arg0: i32) -> (i32, i32) {
    %c0_i32 = arith.constant 0 : i32
    %c0_i32_0 = arith.constant 0 : i32
    %c0_i32_1 = arith.constant 0 : i32
    return %c0_i32, %c0_i32_0 : i32, i32
  }
  func.func @transform_2(%arg0: i32) -> (i32, i32) {
    %c0_i32 = arith.constant 0 : i32
    %c0_i32_0 = arith.constant 0 : i32
    %c0_i32_1 = arith.constant 0 : i32
    return %c0_i32, %c0_i32_0 : i32, i32
  }
  func.func @transform_3(%arg0: i32) -> (i32, i32) {
    %c0_i32 = arith.constant 0 : i32
    %c0_i32_0 = arith.constant 0 : i32
    %c0_i32_1 = arith.constant 0 : i32
    return %c0_i32, %c0_i32_0 : i32, i32
  }
  func.func @transform_4(%arg0: i32) -> (i32, i32) {
    %c0_i32 = arith.constant 0 : i32
    %c0_i32_0 = arith.constant 0 : i32
    %c0_i32_1 = arith.constant 0 : i32
    return %c0_i32, %c0_i32_0 : i32, i32
  }
  func.func @transform_5(%arg0: i32) -> (i32, i32) {
    %c0_i32 = arith.constant 0 : i32
    %c0_i32_0 = arith.constant 0 : i32
    %c0_i32_1 = arith.constant 0 : i32
    return %c0_i32, %c0_i32_0 : i32, i32
  }
  func.func @transform_6(%arg0: i32) -> (i32, i32) {
    %c0_i32 = arith.constant 0 : i32
    %c0_i32_0 = arith.constant 0 : i32
    %c0_i32_1 = arith.constant 0 : i32
    return %c0_i32, %c0_i32_0 : i32, i32
  }
  func.func @transform_7(%arg0: i32) -> (i32, i32, i32) {
    %c0_i32 = arith.constant 0 : i32
    %c0_i32_0 = arith.constant 0 : i32
    %c0_i32_1 = arith.constant 0 : i32
    return %arg0, %c0_i32, %c0_i32_0 : i32, i32, i32
  }
}

module attributes {stable_mosaic.version = 11 : i64} {
  func.func @temporal_block_kernel(%arg0: i32, %arg1: memref<2x16x128xf32, #tpu.memory_space<vmem>>, %arg2: memref<256x128xbf16, #tpu.memory_space<vmem>>, %arg3: memref<1x128xf32, #tpu.memory_space<vmem>>, %arg4: memref<256x128xbf16, #tpu.memory_space<vmem>>, %arg5: memref<1x128xf32, #tpu.memory_space<vmem>>, %arg6: memref<2x16x128xf32, #tpu.memory_space<vmem>>) attributes {dimension_semantics = [#tpu.dimension_semantics<parallel>], iteration_bounds = array<i64: 1>, scalar_prefetch = 0 : i64, scratch_operands = 0 : i64, tpu.core_type = #tpu.core_type<tc>, window_params = [{transform_indices = @transform_0, window_bounds = array<i64: 2, 16, 128>}, {pipeline_mode = #tpu.pipeline_mode<synchronous>, transform_indices = @transform_1, window_bounds = array<i64: 256, 128>}, {pipeline_mode = #tpu.pipeline_mode<synchronous>, transform_indices = @transform_2, window_bounds = array<i64: 1, 128>}, {pipeline_mode = #tpu.pipeline_mode<synchronous>, transform_indices = @transform_3, window_bounds = array<i64: 256, 128>}, {pipeline_mode = #tpu.pipeline_mode<synchronous>, transform_indices = @transform_4, window_bounds = array<i64: 1, 128>}, {transform_indices = @transform_5, window_bounds = array<i64: 2, 16, 128>}]} {
    %c0 = arith.constant 0 : index
    %c0_0 = arith.constant 0 : index
    %c0_1 = arith.constant 0 : index
    %0 = vector.load %arg1[%c0, %c0_0, %c0_1] : memref<2x16x128xf32, #tpu.memory_space<vmem>>, vector<2x16x128xf32>
    %1 = vector.shape_cast %0 : vector<2x16x128xf32> to vector<32x128xf32>
    %2 = tpu.iota {dimensions = array<i32: 1>} : vector<2x16x128xi32>
    %3 = vector.shape_cast %2 : vector<2x16x128xi32> to vector<32x128xi32>
    %c2_i32 = arith.constant 2 : i32
    %4 = tpu.dynamic_rotate %1 by %c2_i32 dim 0 : vector<32x128xf32>, i32 -> vector<32x128xf32>
    %c2_i32_2 = arith.constant 2 : i32
    %5 = vector.broadcast %c2_i32_2 : i32 to vector<32x128xi32>
    %6 = arith.cmpi slt, %3, %5 : vector<32x128xi32>
    %cst = arith.constant 0.000000e+00 : f32
    %7 = vector.broadcast %cst : f32 to vector<32x128xf32>
    %8 = arith.select %6, %7, %4 : vector<32x128xi1>, vector<32x128xf32>
    %9 = tpu.concatenate %8, %1 in 1 : vector<32x128xf32>, vector<32x128xf32> -> vector<32x256xf32>
    %10 = arith.truncf %9 : vector<32x256xf32> to vector<32x256xbf16>
    %c0_3 = arith.constant 0 : index
    %c0_4 = arith.constant 0 : index
    %11 = vector.load %arg2[%c0_3, %c0_4] : memref<256x128xbf16, #tpu.memory_space<vmem>>, vector<256x128xbf16>
    %cst_5 = arith.constant dense<0.000000e+00> : vector<32x128xf32>
    %12 = tpu.matmul %10, %11, %cst_5 {dimension_numbers = #tpu.dot_dimension_numbers<[1], [0], [0], [1], [0, 0, 1, 1], [], []>} : vector<32x256xbf16>, vector<256x128xbf16>, vector<32x128xf32> -> vector<32x128xf32>
    %c0_6 = arith.constant 0 : index
    %c0_7 = arith.constant 0 : index
    %13 = vector.load %arg3[%c0_6, %c0_7] : memref<1x128xf32, #tpu.memory_space<vmem>>, vector<1x128xf32>
    %14 = vector.broadcast %13 : vector<1x128xf32> to vector<32x128xf32>
    %15 = arith.addf %12, %14 : vector<32x128xf32>
    %cst_8 = arith.constant 0.000000e+00 : f32
    %16 = vector.broadcast %cst_8 : f32 to vector<32x128xf32>
    %17 = arith.maximumf %15, %16 : vector<32x128xf32>
    %18 = tpu.iota {dimensions = array<i32: 1>} : vector<2x16x128xi32>
    %19 = vector.shape_cast %18 : vector<2x16x128xi32> to vector<32x128xi32>
    %c2_i32_9 = arith.constant 2 : i32
    %20 = tpu.dynamic_rotate %17 by %c2_i32_9 dim 0 : vector<32x128xf32>, i32 -> vector<32x128xf32>
    %c2_i32_10 = arith.constant 2 : i32
    %21 = vector.broadcast %c2_i32_10 : i32 to vector<32x128xi32>
    %22 = arith.cmpi slt, %19, %21 : vector<32x128xi32>
    %cst_11 = arith.constant 0.000000e+00 : f32
    %23 = vector.broadcast %cst_11 : f32 to vector<32x128xf32>
    %24 = arith.select %22, %23, %20 : vector<32x128xi1>, vector<32x128xf32>
    %25 = tpu.concatenate %24, %17 in 1 : vector<32x128xf32>, vector<32x128xf32> -> vector<32x256xf32>
    %26 = arith.truncf %25 : vector<32x256xf32> to vector<32x256xbf16>
    %c0_12 = arith.constant 0 : index
    %c0_13 = arith.constant 0 : index
    %27 = vector.load %arg4[%c0_12, %c0_13] : memref<256x128xbf16, #tpu.memory_space<vmem>>, vector<256x128xbf16>
    %cst_14 = arith.constant dense<0.000000e+00> : vector<32x128xf32>
    %28 = tpu.matmul %26, %27, %cst_14 {dimension_numbers = #tpu.dot_dimension_numbers<[1], [0], [0], [1], [0, 0, 1, 1], [], []>} : vector<32x256xbf16>, vector<256x128xbf16>, vector<32x128xf32> -> vector<32x128xf32>
    %c0_15 = arith.constant 0 : index
    %c0_16 = arith.constant 0 : index
    %29 = vector.load %arg5[%c0_15, %c0_16] : memref<1x128xf32, #tpu.memory_space<vmem>>, vector<1x128xf32>
    %30 = vector.broadcast %29 : vector<1x128xf32> to vector<32x128xf32>
    %31 = arith.addf %28, %30 : vector<32x128xf32>
    %cst_17 = arith.constant 0.000000e+00 : f32
    %32 = vector.broadcast %cst_17 : f32 to vector<32x128xf32>
    %33 = arith.maximumf %31, %32 : vector<32x128xf32>
    %34 = arith.addf %33, %1 : vector<32x128xf32>
    %cst_18 = arith.constant 0.000000e+00 : f32
    %35 = vector.broadcast %cst_18 : f32 to vector<32x128xf32>
    %36 = arith.maximumf %34, %35 : vector<32x128xf32>
    %37 = vector.shape_cast %36 : vector<32x128xf32> to vector<2x16x128xf32>
    %c0_19 = arith.constant 0 : index
    %c0_20 = arith.constant 0 : index
    %c0_21 = arith.constant 0 : index
    %38 = vector.load %arg6[%c0_19, %c0_20, %c0_21] : memref<2x16x128xf32, #tpu.memory_space<vmem>>, vector<2x16x128xf32>
    tpu.vector_store %arg6[%c0_19, %c0_20, %c0_21], %37 {strides = array<i32>} : memref<2x16x128xf32, #tpu.memory_space<vmem>>, vector<2x16x128xf32>,
    return
  }
  func.func @transform_0(%arg0: i32) -> (i32, i32, i32) {
    %c0_i32 = arith.constant 0 : i32
    %c0_i32_0 = arith.constant 0 : i32
    %c0_i32_1 = arith.constant 0 : i32
    return %arg0, %c0_i32, %c0_i32_0 : i32, i32, i32
  }
  func.func @transform_1(%arg0: i32) -> (i32, i32) {
    %c0_i32 = arith.constant 0 : i32
    %c0_i32_0 = arith.constant 0 : i32
    %c0_i32_1 = arith.constant 0 : i32
    return %c0_i32, %c0_i32_0 : i32, i32
  }
  func.func @transform_2(%arg0: i32) -> (i32, i32) {
    %c0_i32 = arith.constant 0 : i32
    %c0_i32_0 = arith.constant 0 : i32
    %c0_i32_1 = arith.constant 0 : i32
    return %c0_i32, %c0_i32_0 : i32, i32
  }
  func.func @transform_3(%arg0: i32) -> (i32, i32) {
    %c0_i32 = arith.constant 0 : i32
    %c0_i32_0 = arith.constant 0 : i32
    %c0_i32_1 = arith.constant 0 : i32
    return %c0_i32, %c0_i32_0 : i32, i32
  }
  func.func @transform_4(%arg0: i32) -> (i32, i32) {
    %c0_i32 = arith.constant 0 : i32
    %c0_i32_0 = arith.constant 0 : i32
    %c0_i32_1 = arith.constant 0 : i32
    return %c0_i32, %c0_i32_0 : i32, i32
  }
  func.func @transform_5(%arg0: i32) -> (i32, i32, i32) {
    %c0_i32 = arith.constant 0 : i32
    %c0_i32_0 = arith.constant 0 : i32
    %c0_i32_1 = arith.constant 0 : i32
    return %arg0, %c0_i32, %c0_i32_0 : i32, i32, i32
  }
}

</mosaic_0001>

<llo_original>
// kernel: temporal_conv_net.2
$region0: #{temporal_conv_net.2}
  #allocation0 [shape = 'u32[]', space=smem, size = 0x4, offset = 0x4, fixed_abs, tag = 'smem constant byte address 0x4 - core index']
  #allocation1 [shape = 'u32[144,128]{1,0:T(1,128)}', space=vmem, size = 0x12000, scoped, tag = 'internal scratch']
  %s0 = inlined_call_operand.vmem [shape: f32[2,16,128], index: 0, kind: input, shape index: {}]
  %s1 = inlined_call_operand.vmem [shape: bf16[256,128], index: 1, kind: input, shape index: {}]
  %s2 = inlined_call_operand.vmem [shape: f32[1,128], index: 2, kind: input, shape index: {}]
  %s3 = inlined_call_operand.vmem [shape: bf16[256,128], index: 3, kind: input, shape index: {}]
  %s4 = inlined_call_operand.vmem [shape: f32[1,128], index: 4, kind: input, shape index: {}]
  %s5 = inlined_call_operand.vmem [shape: bf16[128,128], index: 5, kind: input, shape index: {}]
  %s6 = inlined_call_operand.vmem [shape: f32[1,128], index: 6, kind: input, shape index: {}]
  %s7 = inlined_call_operand.vmem [shape: f32[2,16,128], index: 7, kind: output, shape index: {}]
  %s8 = sld [smem:[#allocation0]]
  $region38: #{temporal_conv_net.2} parent=0
    _
  %s10 = ssub.s32 1, %s8
  %s11 = scalar_select 0, %s10, %s8
  // Predicated region
  $region2: #{temporal_conv_net.2} parent=0 // pred_check
    _
  $region3: #{temporal_conv_net.2} parent=0 // pred_check_branch
    %13 = sbr.rel (0) target = $region5
  $region4: #{temporal_conv_net.2} parent=0 // pred_region
    _
  $region5: #{temporal_conv_net.2} parent=0 // pred_fallthru
    _
  // Predicated region
  $region6: #{temporal_conv_net.2} parent=0 // pred_check
    _
  $region7: #{temporal_conv_net.2} parent=0 // pred_check_branch
    %15 = sbr.rel (0) target = $region9
  $region8: #{temporal_conv_net.2} parent=0 // pred_region
    _
  $region9: #{temporal_conv_net.2} parent=0 // pred_fallthru
    _
  // Predicated region
  $region10: #{temporal_conv_net.2} parent=0 // pred_check
    _
  $region11: #{temporal_conv_net.2} parent=0 // pred_check_branch
    %17 = sbr.rel (0) target = $region13
  $region12: #{temporal_conv_net.2} parent=0 // pred_region
    _
  $region13: #{temporal_conv_net.2} parent=0 // pred_fallthru
    _
  // Predicated region
  $region14: #{temporal_conv_net.2} parent=0 // pred_check
    _
  $region15: #{temporal_conv_net.2} parent=0 // pred_check_branch
    %19 = sbr.rel (0) target = $region17
  $region16: #{temporal_conv_net.2} parent=0 // pred_region
    _
  $region17: #{temporal_conv_net.2} parent=0 // pred_fallthru
    _
  // Predicated region
  $region18: #{temporal_conv_net.2} parent=0 // pred_check
    _
  $region19: #{temporal_conv_net.2} parent=0 // pred_check_branch
    %21 = sbr.rel (0) target = $region21
  $region20: #{temporal_conv_net.2} parent=0 // pred_region
    _
  $region21: #{temporal_conv_net.2} parent=0 // pred_fallthru
    _
  // Predicated region
  $region22: #{temporal_conv_net.2} parent=0 // pred_check
    _
  $region23: #{temporal_conv_net.2} parent=0 // pred_check_branch
    %23 = sbr.rel (0) target = $region25
  $region24: #{temporal_conv_net.2} parent=0 // pred_region
    _
  $region25: #{temporal_conv_net.2} parent=0 // pred_fallthru
    _
  // Predicated region
  $region26: #{temporal_conv_net.2} parent=0 // pred_check
    _
  $region27: #{temporal_conv_net.2} parent=0 // pred_check_branch
    %25 = sbr.rel (0) target = $region29
  $region28: #{temporal_conv_net.2} parent=0 // pred_region
    _
  $region29: #{temporal_conv_net.2} parent=0 // pred_fallthru
    _
  %v27 = vld [vmem:[%s0] sm:$0xff]
  %v28 = vld [vmem:[%s0 + $0x8] sm:$0xff]
  %v29 = vld [vmem:[%s0 + $0x10] sm:$0xff]
  %v30 = vld [vmem:[%s0 + $0x18] sm:$0xff]
  %v31 = vlaneseq
  %v32 = vshrl.u32 %v31, 7
  %v33 = vadd.s32 %v32, 8
  %v34 = vrot.slane %v27, 7
  %v35 = vrot.slane %v28, 7
  %v36 = vrot.slane %v29, 7
  %v37 = vrot.slane %v30, 7
  %vm38 = vcmp.lt.s32.totalorder %v32, 1
  %v39 = vsel %vm38, %v36, %v37
  %v40 = vsel %vm38, %v35, %v36
  %v41 = vsel %vm38, %v34, %v35
  %v42 = vsel %vm38, %v37, %v34
  %vm43 = vcmp.lt.s32.totalorder %v33, 1
  %v44 = vsel %vm38, 0.0, %v42
  %v45 = vsel %vm43, 0.0, %v41
  %v46 = vsel %vm38, 0.0, %v40
  %v47 = vsel %vm43, 0.0, %v39
  %v48 = vpack.c.bf16 %v45, %v44
  %v49 = vpack.c.bf16 %v28, %v27
  %v50 = vpack.c.bf16 %v47, %v46
  %v51 = vpack.c.bf16 %v30, %v29
  %v52 = vld [vmem:[%s1] sm:$0xf]
  %v53 = vld [vmem:[%s1 + $0x4] sm:$0xf]
  %v54 = vld [vmem:[%s1 + $0x8] sm:$0xf]
  %v55 = vld [vmem:[%s1 + $0xc] sm:$0xf]
  %v56 = vld [vmem:[%s1 + $0x10] sm:$0xf]
  %v57 = vld [vmem:[%s1 + $0x14] sm:$0xf]
  %v58 = vld [vmem:[%s1 + $0x18] sm:$0xf]
  %v59 = vld [vmem:[%s1 + $0x1c] sm:$0xf]
  %v60 = vld [vmem:[%s1 + $0x20] sm:$0xf]
  %v61 = vld [vmem:[%s1 + $0x24] sm:$0xf]
  %v62 = vld [vmem:[%s1 + $0x28] sm:$0xf]
  %v63 = vld [vmem:[%s1 + $0x2c] sm:$0xf]
  %v64 = vld [vmem:[%s1 + $0x30] sm:$0xf]
  %v65 = vld [vmem:[%s1 + $0x34] sm:$0xf]
  %v66 = vld [vmem:[%s1 + $0x38] sm:$0xf]
  %v67 = vld [vmem:[%s1 + $0x3c] sm:$0xf]
  %v68 = vld [vmem:[%s1 + $0x40] sm:$0xf]
  %v69 = vld [vmem:[%s1 + $0x44] sm:$0xf]
  %v70 = vld [vmem:[%s1 + $0x48] sm:$0xf]
  %v71 = vld [vmem:[%s1 + $0x4c] sm:$0xf]
  %v72 = vld [vmem:[%s1 + $0x50] sm:$0xf]
  %v73 = vld [vmem:[%s1 + $0x54] sm:$0xf]
  %v74 = vld [vmem:[%s1 + $0x58] sm:$0xf]
  %v75 = vld [vmem:[%s1 + $0x5c] sm:$0xf]
  %v76 = vld [vmem:[%s1 + $0x60] sm:$0xf]
  %v77 = vld [vmem:[%s1 + $0x64] sm:$0xf]
  %v78 = vld [vmem:[%s1 + $0x68] sm:$0xf]
  %v79 = vld [vmem:[%s1 + $0x6c] sm:$0xf]
  %v80 = vld [vmem:[%s1 + $0x70] sm:$0xf]
  %v81 = vld [vmem:[%s1 + $0x74] sm:$0xf]
  %v82 = vld [vmem:[%s1 + $0x78] sm:$0xf]
  %v83 = vld [vmem:[%s1 + $0x7c] sm:$0xf]
  %v84 = vld [vmem:[%s2] sm:$0x1]
  %v86 = vlaneseq
  %v87 = vshrl.u32 %v86, 7
  %v88 = vsub.s32 0, %v87
  %v89 = vrot.slane %v84, %v88
  %v123 = vunpack.c.l.b16 %v52
  %v124 = vunpack.c.l.b16 %v53
  %v125 = vunpack.c.l.b16 %v54
  %v126 = vunpack.c.l.b16 %v55
  %v127 = vunpack.c.l.b16 %v56
  %v128 = vunpack.c.l.b16 %v57
  %v129 = vunpack.c.l.b16 %v58
  %v130 = vunpack.c.l.b16 %v59
  %v131 = vunpack.c.l.b16 %v60
  %v132 = vunpack.c.l.b16 %v61
  %v133 = vunpack.c.l.b16 %v62
  %v134 = vunpack.c.l.b16 %v63
  %v135 = vunpack.c.l.b16 %v64
  %v136 = vunpack.c.l.b16 %v65
  %v137 = vunpack.c.l.b16 %v66
  %v138 = vunpack.c.l.b16 %v67
  %v139 = vunpack.c.l.b16 %v68
  %v140 = vunpack.c.l.b16 %v69
  %v141 = vunpack.c.l.b16 %v70
  %v142 = vunpack.c.l.b16 %v71
  %v143 = vunpack.c.l.b16 %v72
  %v144 = vunpack.c.l.b16 %v73
  %v145 = vunpack.c.l.b16 %v74
  %v146 = vunpack.c.l.b16 %v75
  %v147 = vunpack.c.l.b16 %v76
  %v148 = vunpack.c.l.b16 %v77
  %v149 = vunpack.c.l.b16 %v78
  %v150 = vunpack.c.l.b16 %v79
  %v151 = vunpack.c.l.b16 %v80
  %v152 = vunpack.c.l.b16 %v81
  %v153 = vunpack.c.l.b16 %v82
  %v154 = vunpack.c.l.b16 %v83
  %v155 = vpack.c.b16 %v124, %v123
  %v156 = vpack.c.b16 %v126, %v125
  %v157 = vpack.c.b16 %v128, %v127
  %v158 = vpack.c.b16 %v130, %v129
  %v159 = vpack.c.b16 %v132, %v131
  %v160 = vpack.c.b16 %v134, %v133
  %v161 = vpack.c.b16 %v136, %v135
  %v162 = vpack.c.b16 %v138, %v137
  %v163 = vpack.c.b16 %v140, %v139
  %v164 = vpack.c.b16 %v142, %v141
  %v165 = vpack.c.b16 %v144, %v143
  %v166 = vpack.c.b16 %v146, %v145
  %v167 = vpack.c.b16 %v148, %v147
  %v168 = vpack.c.b16 %v150, %v149
  %v169 = vpack.c.b16 %v152, %v151
  %v170 = vpack.c.b16 %v154, %v153
  %187 = vmatprep.subr.bf16.mxu0 0
  %188 = vmatpush1.bf16.msra.mxu0 %v162
  %189 = vmatprep.subr.bf16.mxu0 0
  %190 = vmatpush1.bf16.msra.mxu0 %v161
  %191 = vmatprep.subr.bf16.mxu0 0
  %192 = vmatpush1.bf16.msra.mxu0 %v160
  %193 = vmatprep.subr.bf16.mxu0 0
  %194 = vmatpush1.bf16.msra.mxu0 %v159
  %195 = vmatprep.subr.bf16.mxu0 0
  %196 = vmatpush1.bf16.msra.mxu0 %v158
  %197 = vmatprep.subr.bf16.mxu0 0
  %198 = vmatpush1.bf16.msra.mxu0 %v157
  %199 = vmatprep.subr.bf16.mxu0 0
  %200 = vmatpush1.bf16.msra.mxu0 %v156
  %201 = vmatprep.subr.bf16.mxu0 0
  %202 = vmatpush1.bf16.msra.mxu0 %v155
  %203 = vmatprep.subr.bf16.mxu0 0
  %204 = vmatpush2.bf16.msra.mxu0 %v170
  %205 = vmatprep.subr.bf16.mxu0 0
  %206 = vmatpush2.bf16.msra.mxu0 %v169
  %207 = vmatprep.subr.bf16.mxu0 0
  %208 = vmatpush2.bf16.msra.mxu0 %v168
  %209 = vmatprep.subr.bf16.mxu0 0
  %210 = vmatpush2.bf16.msra.mxu0 %v167
  %211 = vmatprep.subr.bf16.mxu0 0
  %212 = vmatpush2.bf16.msra.mxu0 %v166
  %213 = vmatprep.subr.bf16.mxu0 0
  %214 = vmatpush2.bf16.msra.mxu0 %v165
  %215 = vmatprep.subr.bf16.mxu0 0
  %216 = vmatpush2.bf16.msra.mxu0 %v164
  %217 = vmatprep.subr.bf16.mxu0 0
  %218 = vmatpush2.bf16.msra.mxu0 %v163
  %219 = vmatprep.mubr.bf16.mxu0 %v49
  %220 = vmatmul.mubr.bf16.gmra.mxu0 %v48
  %v221 = vpop.f32.mrf.mxu0
  %v222 = vadd.f32 %v89, %v221
  %v223 = vpop.f32.mrf.mxu0
  %v224 = vpop.f32.mrf.mxu0
  %v225 = vadd.f32 %v89, %v224
  %v226 = vpop.f32.mrf.mxu0
  %227 = vmatprep.mubr.bf16.mxu0 %v51
  %228 = vmatmul.mubr.bf16.gmra.mxu0 %v50
  %v229 = vpop.f32.mrf.mxu0
  %v230 = vadd.f32 %v89, %v229
  %v231 = vpop.f32.mrf.mxu0
  %v232 = vpop.f32.mrf.mxu0
  %v233 = vadd.f32 %v89, %v232
  %v234 = vpop.f32.mrf.mxu0
  %235 = vdwg.mxu0
  %v236 = vmax.f32 %v222, 0.0
  %v237 = vmax.f32 %v225, 0.0
  %v238 = vmax.f32 %v230, 0.0
  %v239 = vmax.f32 %v233, 0.0
  %v240 = vrot.slane %v236, 7
  %v241 = vrot.slane %v237, 7
  %v242 = vrot.slane %v238, 7
  %v243 = vrot.slane %v239, 7
  %v244 = vsel %vm38, %v242, %v243
  %v245 = vsel %vm38, %v241, %v242
  %v246 = vsel %vm38, %v240, %v241
  %v247 = vsel %vm38, %v243, %v240
  %v248 = vsel %vm38, 0.0, %v247
  %v249 = vsel %vm43, 0.0, %v246
  %v250 = vsel %vm38, 0.0, %v245
  %v251 = vsel %vm43, 0.0, %v244
  %v252 = vpack.c.bf16 %v249, %v248
  %v253 = vpack.c.bf16 %v237, %v236
  %v254 = vpack.c.bf16 %v251, %v250
  %v255 = vpack.c.bf16 %v239, %v238
  %v256 = vld [vmem:[%s3] sm:$0xf]
  %v257 = vld [vmem:[%s3 + $0x4] sm:$0xf]
  %v258 = vld [vmem:[%s3 + $0x8] sm:$0xf]
  %v259 = vld [vmem:[%s3 + $0xc] sm:$0xf]
  %v260 = vld [vmem:[%s3 + $0x10] sm:$0xf]
  %v261 = vld [vmem:[%s3 + $0x14] sm:$0xf]
  %v262 = vld [vmem:[%s3 + $0x18] sm:$0xf]
  %v263 = vld [vmem:[%s3 + $0x1c] sm:$0xf]
  %v264 = vld [vmem:[%s3 + $0x20] sm:$0xf]
  %v265 = vld [vmem:[%s3 + $0x24] sm:$0xf]
  %v266 = vld [vmem:[%s3 + $0x28] sm:$0xf]
  %v267 = vld [vmem:[%s3 + $0x2c] sm:$0xf]
  %v268 = vld [vmem:[%s3 + $0x30] sm:$0xf]
  %v269 = vld [vmem:[%s3 + $0x34] sm:$0xf]
  %v270 = vld [vmem:[%s3 + $0x38] sm:$0xf]
  %v271 = vld [vmem:[%s3 + $0x3c] sm:$0xf]
  %v272 = vld [vmem:[%s3 + $0x40] sm:$0xf]
  %v273 = vld [vmem:[%s3 + $0x44] sm:$0xf]
  %v274 = vld [vmem:[%s3 + $0x48] sm:$0xf]
  %v275 = vld [vmem:[%s3 + $0x4c] sm:$0xf]
  %v276 = vld [vmem:[%s3 + $0x50] sm:$0xf]
  %v277 = vld [vmem:[%s3 + $0x54] sm:$0xf]
  %v278 = vld [vmem:[%s3 + $0x58] sm:$0xf]
  %v279 = vld [vmem:[%s3 + $0x5c] sm:$0xf]
  %v280 = vld [vmem:[%s3 + $0x60] sm:$0xf]
  %v281 = vld [vmem:[%s3 + $0x64] sm:$0xf]
  %v282 = vld [vmem:[%s3 + $0x68] sm:$0xf]
  %v283 = vld [vmem:[%s3 + $0x6c] sm:$0xf]
  %v284 = vld [vmem:[%s3 + $0x70] sm:$0xf]
  %v285 = vld [vmem:[%s3 + $0x74] sm:$0xf]
  %v286 = vld [vmem:[%s3 + $0x78] sm:$0xf]
  %v287 = vld [vmem:[%s3 + $0x7c] sm:$0xf]
  %v288 = vld [vmem:[%s4] sm:$0x1]
  %v290 = vlaneseq
  %v291 = vshrl.u32 %v290, 7
  %v292 = vsub.s32 0, %v291
  %v293 = vrot.slane %v288, %v292
  %v327 = vunpack.c.l.b16 %v256
  %v328 = vunpack.c.l.b16 %v257
  %v329 = vunpack.c.l.b16 %v258
  %v330 = vunpack.c.l.b16 %v259
  %v331 = vunpack.c.l.b16 %v260
  %v332 = vunpack.c.l.b16 %v261
  %v333 = vunpack.c.l.b16 %v262
  %v334 = vunpack.c.l.b16 %v263
  %v335 = vunpack.c.l.b16 %v264
  %v336 = vunpack.c.l.b16 %v265
  %v337 = vunpack.c.l.b16 %v266
  %v338 = vunpack.c.l.b16 %v267
  %v339 = vunpack.c.l.b16 %v268
  %v340 = vunpack.c.l.b16 %v269
  %v341 = vunpack.c.l.b16 %v270
  %v342 = vunpack.c.l.b16 %v271
  %v343 = vunpack.c.l.b16 %v272
  %v344 = vunpack.c.l.b16 %v273
  %v345 = vunpack.c.l.b16 %v274
  %v346 = vunpack.c.l.b16 %v275
  %v347 = vunpack.c.l.b16 %v276
  %v348 = vunpack.c.l.b16 %v277
  %v349 = vunpack.c.l.b16 %v278
  %v350 = vunpack.c.l.b16 %v279
  %v351 = vunpack.c.l.b16 %v280
  %v352 = vunpack.c.l.b16 %v281
  %v353 = vunpack.c.l.b16 %v282
  %v354 = vunpack.c.l.b16 %v283
  %v355 = vunpack.c.l.b16 %v284
  %v356 = vunpack.c.l.b16 %v285
  %v357 = vunpack.c.l.b16 %v286
  %v358 = vunpack.c.l.b16 %v287
  %v359 = vpack.c.b16 %v328, %v327
  %v360 = vpack.c.b16 %v330, %v329
  %v361 = vpack.c.b16 %v332, %v331
  %v362 = vpack.c.b16 %v334, %v333
  %v363 = vpack.c.b16 %v336, %v335
  %v364 = vpack.c.b16 %v338, %v337
  %v365 = vpack.c.b16 %v340, %v339
  %v366 = vpack.c.b16 %v342, %v341
  %v367 = vpack.c.b16 %v344, %v343
  %v368 = vpack.c.b16 %v346, %v345
  %v369 = vpack.c.b16 %v348, %v347
  %v370 = vpack.c.b16 %v350, %v349
  %v371 = vpack.c.b16 %v352, %v351
  %v372 = vpack.c.b16 %v354, %v353
  %v373 = vpack.c.b16 %v356, %v355
  %v374 = vpack.c.b16 %v358, %v357
  %391 = vmatprep.subr.bf16.mxu0 0
  %392 = vmatpush1.bf16.msra.mxu0 %v366
  %393 = vmatprep.subr.bf16.mxu0 0
  %394 = vmatpush1.bf16.msra.mxu0 %v365
  %395 = vmatprep.subr.bf16.mxu0 0
  %396 = vmatpush1.bf16.msra.mxu0 %v364
  %397 = vmatprep.subr.bf16.mxu0 0
  %398 = vmatpush1.bf16.msra.mxu0 %v363
  %399 = vmatprep.subr.bf16.mxu0 0
  %400 = vmatpush1.bf16.msra.mxu0 %v362
  %401 = vmatprep.subr.bf16.mxu0 0
  %402 = vmatpush1.bf16.msra.mxu0 %v361
  %403 = vmatprep.subr.bf16.mxu0 0
  %404 = vmatpush1.bf16.msra.mxu0 %v360
  %405 = vmatprep.subr.bf16.mxu0 0
  %406 = vmatpush1.bf16.msra.mxu0 %v359
  %407 = vmatprep.subr.bf16.mxu0 0
  %408 = vmatpush2.bf16.msra.mxu0 %v374
  %409 = vmatprep.subr.bf16.mxu0 0
  %410 = vmatpush2.bf16.msra.mxu0 %v373
  %411 = vmatprep.subr.bf16.mxu0 0
  %412 = vmatpush2.bf16.msra.mxu0 %v372
  %413 = vmatprep.subr.bf16.mxu0 0
  %414 = vmatpush2.bf16.msra.mxu0 %v371
  %415 = vmatprep.subr.bf16.mxu0 0
  %416 = vmatpush2.bf16.msra.mxu0 %v370
  %417 = vmatprep.subr.bf16.mxu0 0
  %418 = vmatpush2.bf16.msra.mxu0 %v369
  %419 = vmatprep.subr.bf16.mxu0 0
  %420 = vmatpush2.bf16.msra.mxu0 %v368
  %421 = vmatprep.subr.bf16.mxu0 0
  %422 = vmatpush2.bf16.msra.mxu0 %v367
  %423 = vmatprep.mubr.bf16.mxu0 %v253
  %424 = vmatmul.mubr.bf16.gmra.mxu0 %v252
  %v425 = vpop.f32.mrf.mxu0
  %v426 = vadd.f32 %v293, %v425
  %v427 = vpop.f32.mrf.mxu0
  %v428 = vpop.f32.mrf.mxu0
  %v429 = vadd.f32 %v293, %v428
  %v430 = vpop.f32.mrf.mxu0
  %431 = vmatprep.mubr.bf16.mxu0 %v255
  %432 = vmatmul.mubr.bf16.gmra.mxu0 %v254
  %v433 = vpop.f32.mrf.mxu0
  %v434 = vadd.f32 %v293, %v433
  %v435 = vpop.f32.mrf.mxu0
  %v436 = vpop.f32.mrf.mxu0
  %v437 = vadd.f32 %v293, %v436
  %v438 = vpop.f32.mrf.mxu0
  %439 = vdwg.mxu0
  %v440 = vmax.f32 %v426, 0.0
  %v441 = vmax.f32 %v429, 0.0
  %v442 = vmax.f32 %v434, 0.0
  %v443 = vmax.f32 %v437, 0.0
  %v444 = vld [vmem:[%s5] sm:$0xf]
  %v445 = vld [vmem:[%s5 + $0x4] sm:$0xf]
  %v446 = vld [vmem:[%s5 + $0x8] sm:$0xf]
  %v447 = vld [vmem:[%s5 + $0xc] sm:$0xf]
  %v448 = vld [vmem:[%s5 + $0x10] sm:$0xf]
  %v449 = vld [vmem:[%s5 + $0x14] sm:$0xf]
  %v450 = vld [vmem:[%s5 + $0x18] sm:$0xf]
  %v451 = vld [vmem:[%s5 + $0x1c] sm:$0xf]
  %v452 = vld [vmem:[%s5 + $0x20] sm:$0xf]
  %v453 = vld [vmem:[%s5 + $0x24] sm:$0xf]
  %v454 = vld [vmem:[%s5 + $0x28] sm:$0xf]
  %v455 = vld [vmem:[%s5 + $0x2c] sm:$0xf]
  %v456 = vld [vmem:[%s5 + $0x30] sm:$0xf]
  %v457 = vld [vmem:[%s5 + $0x34] sm:$0xf]
  %v458 = vld [vmem:[%s5 + $0x38] sm:$0xf]
  %v459 = vld [vmem:[%s5 + $0x3c] sm:$0xf]
  %v460 = vld [vmem:[%s6] sm:$0x1]
  %v462 = vlaneseq
  %v463 = vshrl.u32 %v462, 7
  %v464 = vsub.s32 0, %v463
  %v465 = vrot.slane %v460, %v464
  %v483 = vunpack.c.l.b16 %v444
  %v484 = vunpack.c.l.b16 %v445
  %v485 = vunpack.c.l.b16 %v446
  %v486 = vunpack.c.l.b16 %v447
  %v487 = vunpack.c.l.b16 %v448
  %v488 = vunpack.c.l.b16 %v449
  %v489 = vunpack.c.l.b16 %v450
  %v490 = vunpack.c.l.b16 %v451
  %v491 = vunpack.c.l.b16 %v452
  %v492 = vunpack.c.l.b16 %v453
  %v493 = vunpack.c.l.b16 %v454
  %v494 = vunpack.c.l.b16 %v455
  %v495 = vunpack.c.l.b16 %v456
  %v496 = vunpack.c.l.b16 %v457
  %v497 = vunpack.c.l.b16 %v458
  %v498 = vunpack.c.l.b16 %v459
  %v499 = vpack.c.b16 %v484, %v483
  %v500 = vpack.c.b16 %v486, %v485
  %v501 = vpack.c.b16 %v488, %v487
  %v502 = vpack.c.b16 %v490, %v489
  %v503 = vpack.c.b16 %v492, %v491
  %v504 = vpack.c.b16 %v494, %v493
  %v505 = vpack.c.b16 %v496, %v495
  %v506 = vpack.c.b16 %v498, %v497
  %515 = vmatprep.subr.bf16.mxu0 0
  %516 = vmatpush1.bf16.msra.mxu0 %v506
  %517 = vmatprep.subr.bf16.mxu0 0
  %518 = vmatpush1.bf16.msra.mxu0 %v505
  %519 = vmatprep.subr.bf16.mxu0 0
  %520 = vmatpush1.bf16.msra.mxu0 %v504
  %521 = vmatprep.subr.bf16.mxu0 0
  %522 = vmatpush1.bf16.msra.mxu0 %v503
  %523 = vmatprep.subr.bf16.mxu0 0
  %524 = vmatpush1.bf16.msra.mxu0 %v502
  %525 = vmatprep.subr.bf16.mxu0 0
  %526 = vmatpush1.bf16.msra.mxu0 %v501
  %527 = vmatprep.subr.bf16.mxu0 0
  %528 = vmatpush1.bf16.msra.mxu0 %v500
  %529 = vmatprep.subr.bf16.mxu0 0
  %530 = vmatpush1.bf16.msra.mxu0 %v499
  %531 = vmatprep.subr.bf16.mxu0 0
  %532 = vmatpush2.bf16.msra.mxu0 0
  %533 = vmatprep.subr.bf16.mxu0 0
  %534 = vmatpush2.bf16.msra.mxu0 0
  %535 = vmatprep.subr.bf16.mxu0 0
  %536 = vmatpush2.bf16.msra.mxu0 0
  %537 = vmatprep.subr.bf16.mxu0 0
  %538 = vmatpush2.bf16.msra.mxu0 0
  %539 = vmatprep.subr.bf16.mxu0 0
  %540 = vmatpush2.bf16.msra.mxu0 0
  %541 = vmatprep.subr.bf16.mxu0 0
  %542 = vmatpush2.bf16.msra.mxu0 0
  %543 = vmatprep.subr.bf16.mxu0 0
  %544 = vmatpush2.bf16.msra.mxu0 0
  %545 = vmatprep.subr.bf16.mxu0 0
  %546 = vmatpush2.bf16.msra.mxu0 0
  %547 = vmatprep.mubr.bf16.mxu0 0
  %548 = vmatmul.mubr.bf16.gmra.mxu0 %v49
  %v549 = vpop.f32.mrf.mxu0
  %v550 = vadd.f32 %v465, %v549
  %v551 = vpop.f32.mrf.mxu0
  %v552 = vpop.f32.mrf.mxu0
  %v553 = vadd.f32 %v465, %v552
  %v554 = vpop.f32.mrf.mxu0
  %555 = vmatprep.mubr.bf16.mxu0 0
  %556 = vmatmul.mubr.bf16.gmra.mxu0 %v51
  %v557 = vpop.f32.mrf.mxu0
  %v558 = vadd.f32 %v465, %v557
  %v559 = vpop.f32.mrf.mxu0
  %v560 = vpop.f32.mrf.mxu0
  %v561 = vadd.f32 %v465, %v560
  %v562 = vpop.f32.mrf.mxu0
  %563 = vdwg.mxu0
  %v564 = vadd.f32 %v440, %v550
  %v565 = vadd.f32 %v441, %v553
  %v566 = vadd.f32 %v442, %v558
  %v567 = vadd.f32 %v443, %v561
  %v568 = vmax.f32 %v564, 0.0
  %v569 = vmax.f32 %v565, 0.0
  %v570 = vmax.f32 %v566, 0.0
  %v571 = vmax.f32 %v567, 0.0
  %572 = vst [vmem:[%s7] sm:$0xff] %v568
  %573 = vst [vmem:[%s7 + $0x8] sm:$0xff] %v569
  %574 = vst [vmem:[%s7 + $0x10] sm:$0xff] %v570
  %575 = vst [vmem:[%s7 + $0x18] sm:$0xff] %v571
  // Predicated region
  $region30: #{temporal_conv_net.2} parent=0 // pred_check
    _
  $region31: #{temporal_conv_net.2} parent=0 // pred_check_branch
    %577 = sbr.rel (0) target = $region33
  $region32: #{temporal_conv_net.2} parent=0 // pred_region
    _
  $region33: #{temporal_conv_net.2} parent=0 // pred_fallthru
    _
  // Predicated region
  $region34: #{temporal_conv_net.2} parent=0 // pred_check
    _
  $region35: #{temporal_conv_net.2} parent=0 // pred_check_branch
    %579 = sbr.rel (0) target = $region37
  $region36: #{temporal_conv_net.2} parent=0 // pred_region
    _
  $region37: #{temporal_conv_net.2} parent=0 // pred_fallthru
    _

// kernel: temporal_conv_net.3
$region0: #{temporal_conv_net.3}
  #allocation0 [shape = 'u32[]', space=smem, size = 0x4, offset = 0x4, fixed_abs, tag = 'smem constant byte address 0x4 - core index']
  #allocation1 [shape = 'u32[144,128]{1,0:T(1,128)}', space=vmem, size = 0x12000, scoped, tag = 'internal scratch']
  %s0 = inlined_call_operand.vmem [shape: f32[2,16,128], index: 0, kind: input, shape index: {}]
  %s1 = inlined_call_operand.vmem [shape: bf16[256,128], index: 1, kind: input, shape index: {}]
  %s2 = inlined_call_operand.vmem [shape: f32[1,128], index: 2, kind: input, shape index: {}]
  %s3 = inlined_call_operand.vmem [shape: bf16[256,128], index: 3, kind: input, shape index: {}]
  %s4 = inlined_call_operand.vmem [shape: f32[1,128], index: 4, kind: input, shape index: {}]
  %s5 = inlined_call_operand.vmem [shape: f32[2,16,128], index: 5, kind: output, shape index: {}]
  %s6 = sld [smem:[#allocation0]]
  $region30: #{temporal_conv_net.3} parent=0
    _
  %s8 = ssub.s32 1, %s6
  %s9 = scalar_select 0, %s8, %s6
  // Predicated region
  $region2: #{temporal_conv_net.3} parent=0 // pred_check
    _
  $region3: #{temporal_conv_net.3} parent=0 // pred_check_branch
    %11 = sbr.rel (0) target = $region5
  $region4: #{temporal_conv_net.3} parent=0 // pred_region
    _
  $region5: #{temporal_conv_net.3} parent=0 // pred_fallthru
    _
  // Predicated region
  $region6: #{temporal_conv_net.3} parent=0 // pred_check
    _
  $region7: #{temporal_conv_net.3} parent=0 // pred_check_branch
    %13 = sbr.rel (0) target = $region9
  $region8: #{temporal_conv_net.3} parent=0 // pred_region
    _
  $region9: #{temporal_conv_net.3} parent=0 // pred_fallthru
    _
  // Predicated region
  $region10: #{temporal_conv_net.3} parent=0 // pred_check
    _
  $region11: #{temporal_conv_net.3} parent=0 // pred_check_branch
    %15 = sbr.rel (0) target = $region13
  $region12: #{temporal_conv_net.3} parent=0 // pred_region
    _
  $region13: #{temporal_conv_net.3} parent=0 // pred_fallthru
    _
  // Predicated region
  $region14: #{temporal_conv_net.3} parent=0 // pred_check
    _
  $region15: #{temporal_conv_net.3} parent=0 // pred_check_branch
    %17 = sbr.rel (0) target = $region17
  $region16: #{temporal_conv_net.3} parent=0 // pred_region
    _
  $region17: #{temporal_conv_net.3} parent=0 // pred_fallthru
    _
  // Predicated region
  $region18: #{temporal_conv_net.3} parent=0 // pred_check
    _
  $region19: #{temporal_conv_net.3} parent=0 // pred_check_branch
    %19 = sbr.rel (0) target = $region21
  $region20: #{temporal_conv_net.3} parent=0 // pred_region
    _
  $region21: #{temporal_conv_net.3} parent=0 // pred_fallthru
    _
  %v21 = vld [vmem:[%s0] sm:$0xff]
  %v22 = vld [vmem:[%s0 + $0x8] sm:$0xff]
  %v23 = vld [vmem:[%s0 + $0x10] sm:$0xff]
  %v24 = vld [vmem:[%s0 + $0x18] sm:$0xff]
  %v25 = vlaneseq
  %v26 = vshrl.u32 %v25, 7
  %v27 = vadd.s32 %v26, 8
  %v28 = vrot.slane %v21, 6
  %v29 = vrot.slane %v22, 6
  %v30 = vrot.slane %v23, 6
  %v31 = vrot.slane %v24, 6
  %vm32 = vcmp.lt.s32.totalorder %v26, 2
  %v33 = vsel %vm32, %v30, %v31
  %v34 = vsel %vm32, %v29, %v30
  %v35 = vsel %vm32, %v28, %v29
  %v36 = vsel %vm32, %v31, %v28
  %vm37 = vcmp.lt.s32.totalorder %v27, 2
  %v38 = vsel %vm32, 0.0, %v36
  %v39 = vsel %vm37, 0.0, %v35
  %v40 = vsel %vm32, 0.0, %v34
  %v41 = vsel %vm37, 0.0, %v33
  %v42 = vpack.c.bf16 %v39, %v38
  %v43 = vpack.c.bf16 %v22, %v21
  %v44 = vpack.c.bf16 %v41, %v40
  %v45 = vpack.c.bf16 %v24, %v23
  %v46 = vld [vmem:[%s1] sm:$0xf]
  %v47 = vld [vmem:[%s1 + $0x4] sm:$0xf]
  %v48 = vld [vmem:[%s1 + $0x8] sm:$0xf]
  %v49 = vld [vmem:[%s1 + $0xc] sm:$0xf]
  %v50 = vld [vmem:[%s1 + $0x10] sm:$0xf]
  %v51 = vld [vmem:[%s1 + $0x14] sm:$0xf]
  %v52 = vld [vmem:[%s1 + $0x18] sm:$0xf]
  %v53 = vld [vmem:[%s1 + $0x1c] sm:$0xf]
  %v54 = vld [vmem:[%s1 + $0x20] sm:$0xf]
  %v55 = vld [vmem:[%s1 + $0x24] sm:$0xf]
  %v56 = vld [vmem:[%s1 + $0x28] sm:$0xf]
  %v57 = vld [vmem:[%s1 + $0x2c] sm:$0xf]
  %v58 = vld [vmem:[%s1 + $0x30] sm:$0xf]
  %v59 = vld [vmem:[%s1 + $0x34] sm:$0xf]
  %v60 = vld [vmem:[%s1 + $0x38] sm:$0xf]
  %v61 = vld [vmem:[%s1 + $0x3c] sm:$0xf]
  %v62 = vld [vmem:[%s1 + $0x40] sm:$0xf]
  %v63 = vld [vmem:[%s1 + $0x44] sm:$0xf]
  %v64 = vld [vmem:[%s1 + $0x48] sm:$0xf]
  %v65 = vld [vmem:[%s1 + $0x4c] sm:$0xf]
  %v66 = vld [vmem:[%s1 + $0x50] sm:$0xf]
  %v67 = vld [vmem:[%s1 + $0x54] sm:$0xf]
  %v68 = vld [vmem:[%s1 + $0x58] sm:$0xf]
  %v69 = vld [vmem:[%s1 + $0x5c] sm:$0xf]
  %v70 = vld [vmem:[%s1 + $0x60] sm:$0xf]
  %v71 = vld [vmem:[%s1 + $0x64] sm:$0xf]
  %v72 = vld [vmem:[%s1 + $0x68] sm:$0xf]
  %v73 = vld [vmem:[%s1 + $0x6c] sm:$0xf]
  %v74 = vld [vmem:[%s1 + $0x70] sm:$0xf]
  %v75 = vld [vmem:[%s1 + $0x74] sm:$0xf]
  %v76 = vld [vmem:[%s1 + $0x78] sm:$0xf]
  %v77 = vld [vmem:[%s1 + $0x7c] sm:$0xf]
  %v78 = vld [vmem:[%s2] sm:$0x1]
  %v80 = vlaneseq
  %v81 = vshrl.u32 %v80, 7
  %v82 = vsub.s32 0, %v81
  %v83 = vrot.slane %v78, %v82
  %v117 = vunpack.c.l.b16 %v46
  %v118 = vunpack.c.l.b16 %v47
  %v119 = vunpack.c.l.b16 %v48
  %v120 = vunpack.c.l.b16 %v49
  %v121 = vunpack.c.l.b16 %v50
  %v122 = vunpack.c.l.b16 %v51
  %v123 = vunpack.c.l.b16 %v52
  %v124 = vunpack.c.l.b16 %v53
  %v125 = vunpack.c.l.b16 %v54
  %v126 = vunpack.c.l.b16 %v55
  %v127 = vunpack.c.l.b16 %v56
  %v128 = vunpack.c.l.b16 %v57
  %v129 = vunpack.c.l.b16 %v58
  %v130 = vunpack.c.l.b16 %v59
  %v131 = vunpack.c.l.b16 %v60
  %v132 = vunpack.c.l.b16 %v61
  %v133 = vunpack.c.l.b16 %v62
  %v134 = vunpack.c.l.b16 %v63
  %v135 = vunpack.c.l.b16 %v64
  %v136 = vunpack.c.l.b16 %v65
  %v137 = vunpack.c.l.b16 %v66
  %v138 = vunpack.c.l.b16 %v67
  %v139 = vunpack.c.l.b16 %v68
  %v140 = vunpack.c.l.b16 %v69
  %v141 = vunpack.c.l.b16 %v70
  %v142 = vunpack.c.l.b16 %v71
  %v143 = vunpack.c.l.b16 %v72
  %v144 = vunpack.c.l.b16 %v73
  %v145 = vunpack.c.l.b16 %v74
  %v146 = vunpack.c.l.b16 %v75
  %v147 = vunpack.c.l.b16 %v76
  %v148 = vunpack.c.l.b16 %v77
  %v149 = vpack.c.b16 %v118, %v117
  %v150 = vpack.c.b16 %v120, %v119
  %v151 = vpack.c.b16 %v122, %v121
  %v152 = vpack.c.b16 %v124, %v123
  %v153 = vpack.c.b16 %v126, %v125
  %v154 = vpack.c.b16 %v128, %v127
  %v155 = vpack.c.b16 %v130, %v129
  %v156 = vpack.c.b16 %v132, %v131
  %v157 = vpack.c.b16 %v134, %v133
  %v158 = vpack.c.b16 %v136, %v135
  %v159 = vpack.c.b16 %v138, %v137
  %v160 = vpack.c.b16 %v140, %v139
  %v161 = vpack.c.b16 %v142, %v141
  %v162 = vpack.c.b16 %v144, %v143
  %v163 = vpack.c.b16 %v146, %v145
  %v164 = vpack.c.b16 %v148, %v147
  %181 = vmatprep.subr.bf16.mxu0 0
  %182 = vmatpush1.bf16.msra.mxu0 %v156
  %183 = vmatprep.subr.bf16.mxu0 0
  %184 = vmatpush1.bf16.msra.mxu0 %v155
  %185 = vmatprep.subr.bf16.mxu0 0
  %186 = vmatpush1.bf16.msra.mxu0 %v154
  %187 = vmatprep.subr.bf16.mxu0 0
  %188 = vmatpush1.bf16.msra.mxu0 %v153
  %189 = vmatprep.subr.bf16.mxu0 0
  %190 = vmatpush1.bf16.msra.mxu0 %v152
  %191 = vmatprep.subr.bf16.mxu0 0
  %192 = vmatpush1.bf16.msra.mxu0 %v151
  %193 = vmatprep.subr.bf16.mxu0 0
  %194 = vmatpush1.bf16.msra.mxu0 %v150
  %195 = vmatprep.subr.bf16.mxu0 0
  %196 = vmatpush1.bf16.msra.mxu0 %v149
  %197 = vmatprep.subr.bf16.mxu0 0
  %198 = vmatpush2.bf16.msra.mxu0 %v164
  %199 = vmatprep.subr.bf16.mxu0 0
  %200 = vmatpush2.bf16.msra.mxu0 %v163
  %201 = vmatprep.subr.bf16.mxu0 0
  %202 = vmatpush2.bf16.msra.mxu0 %v162
  %203 = vmatprep.subr.bf16.mxu0 0
  %204 = vmatpush2.bf16.msra.mxu0 %v161
  %205 = vmatprep.subr.bf16.mxu0 0
  %206 = vmatpush2.bf16.msra.mxu0 %v160
  %207 = vmatprep.subr.bf16.mxu0 0
  %208 = vmatpush2.bf16.msra.mxu0 %v159
  %209 = vmatprep.subr.bf16.mxu0 0
  %210 = vmatpush2.bf16.msra.mxu0 %v158
  %211 = vmatprep.subr.bf16.mxu0 0
  %212 = vmatpush2.bf16.msra.mxu0 %v157
  %213 = vmatprep.mubr.bf16.mxu0 %v43
  %214 = vmatmul.mubr.bf16.gmra.mxu0 %v42
  %v215 = vpop.f32.mrf.mxu0
  %v216 = vadd.f32 %v83, %v215
  %v217 = vpop.f32.mrf.mxu0
  %v218 = vpop.f32.mrf.mxu0
  %v219 = vadd.f32 %v83, %v218
  %v220 = vpop.f32.mrf.mxu0
  %221 = vmatprep.mubr.bf16.mxu0 %v45
  %222 = vmatmul.mubr.bf16.gmra.mxu0 %v44
  %v223 = vpop.f32.mrf.mxu0
  %v224 = vadd.f32 %v83, %v223
  %v225 = vpop.f32.mrf.mxu0
  %v226 = vpop.f32.mrf.mxu0
  %v227 = vadd.f32 %v83, %v226
  %v228 = vpop.f32.mrf.mxu0
  %229 = vdwg.mxu0
  %v230 = vmax.f32 %v216, 0.0
  %v231 = vmax.f32 %v219, 0.0
  %v232 = vmax.f32 %v224, 0.0
  %v233 = vmax.f32 %v227, 0.0
  %v234 = vrot.slane %v230, 6
  %v235 = vrot.slane %v231, 6
  %v236 = vrot.slane %v232, 6
  %v237 = vrot.slane %v233, 6
  %v238 = vsel %vm32, %v236, %v237
  %v239 = vsel %vm32, %v235, %v236
  %v240 = vsel %vm32, %v234, %v235
  %v241 = vsel %vm32, %v237, %v234
  %v242 = vsel %vm32, 0.0, %v241
  %v243 = vsel %vm37, 0.0, %v240
  %v244 = vsel %vm32, 0.0, %v239
  %v245 = vsel %vm37, 0.0, %v238
  %v246 = vpack.c.bf16 %v243, %v242
  %v247 = vpack.c.bf16 %v231, %v230
  %v248 = vpack.c.bf16 %v245, %v244
  %v249 = vpack.c.bf16 %v233, %v232
  %v250 = vld [vmem:[%s3] sm:$0xf]
  %v251 = vld [vmem:[%s3 + $0x4] sm:$0xf]
  %v252 = vld [vmem:[%s3 + $0x8] sm:$0xf]
  %v253 = vld [vmem:[%s3 + $0xc] sm:$0xf]
  %v254 = vld [vmem:[%s3 + $0x10] sm:$0xf]
  %v255 = vld [vmem:[%s3 + $0x14] sm:$0xf]
  %v256 = vld [vmem:[%s3 + $0x18] sm:$0xf]
  %v257 = vld [vmem:[%s3 + $0x1c] sm:$0xf]
  %v258 = vld [vmem:[%s3 + $0x20] sm:$0xf]
  %v259 = vld [vmem:[%s3 + $0x24] sm:$0xf]
  %v260 = vld [vmem:[%s3 + $0x28] sm:$0xf]
  %v261 = vld [vmem:[%s3 + $0x2c] sm:$0xf]
  %v262 = vld [vmem:[%s3 + $0x30] sm:$0xf]
  %v263 = vld [vmem:[%s3 + $0x34] sm:$0xf]
  %v264 = vld [vmem:[%s3 + $0x38] sm:$0xf]
  %v265 = vld [vmem:[%s3 + $0x3c] sm:$0xf]
  %v266 = vld [vmem:[%s3 + $0x40] sm:$0xf]
  %v267 = vld [vmem:[%s3 + $0x44] sm:$0xf]
  %v268 = vld [vmem:[%s3 + $0x48] sm:$0xf]
  %v269 = vld [vmem:[%s3 + $0x4c] sm:$0xf]
  %v270 = vld [vmem:[%s3 + $0x50] sm:$0xf]
  %v271 = vld [vmem:[%s3 + $0x54] sm:$0xf]
  %v272 = vld [vmem:[%s3 + $0x58] sm:$0xf]
  %v273 = vld [vmem:[%s3 + $0x5c] sm:$0xf]
  %v274 = vld [vmem:[%s3 + $0x60] sm:$0xf]
  %v275 = vld [vmem:[%s3 + $0x64] sm:$0xf]
  %v276 = vld [vmem:[%s3 + $0x68] sm:$0xf]
  %v277 = vld [vmem:[%s3 + $0x6c] sm:$0xf]
  %v278 = vld [vmem:[%s3 + $0x70] sm:$0xf]
  %v279 = vld [vmem:[%s3 + $0x74] sm:$0xf]
  %v280 = vld [vmem:[%s3 + $0x78] sm:$0xf]
  %v281 = vld [vmem:[%s3 + $0x7c] sm:$0xf]
  %v282 = vld [vmem:[%s4] sm:$0x1]
  %v284 = vlaneseq
  %v285 = vshrl.u32 %v284, 7
  %v286 = vsub.s32 0, %v285
  %v287 = vrot.slane %v282, %v286
  %v321 = vunpack.c.l.b16 %v250
  %v322 = vunpack.c.l.b16 %v251
  %v323 = vunpack.c.l.b16 %v252
  %v324 = vunpack.c.l.b16 %v253
  %v325 = vunpack.c.l.b16 %v254
  %v326 = vunpack.c.l.b16 %v255
  %v327 = vunpack.c.l.b16 %v256
  %v328 = vunpack.c.l.b16 %v257
  %v329 = vunpack.c.l.b16 %v258
  %v330 = vunpack.c.l.b16 %v259
  %v331 = vunpack.c.l.b16 %v260
  %v332 = vunpack.c.l.b16 %v261
  %v333 = vunpack.c.l.b16 %v262
  %v334 = vunpack.c.l.b16 %v263
  %v335 = vunpack.c.l.b16 %v264
  %v336 = vunpack.c.l.b16 %v265
  %v337 = vunpack.c.l.b16 %v266
  %v338 = vunpack.c.l.b16 %v267
  %v339 = vunpack.c.l.b16 %v268
  %v340 = vunpack.c.l.b16 %v269
  %v341 = vunpack.c.l.b16 %v270
  %v342 = vunpack.c.l.b16 %v271
  %v343 = vunpack.c.l.b16 %v272
  %v344 = vunpack.c.l.b16 %v273
  %v345 = vunpack.c.l.b16 %v274
  %v346 = vunpack.c.l.b16 %v275
  %v347 = vunpack.c.l.b16 %v276
  %v348 = vunpack.c.l.b16 %v277
  %v349 = vunpack.c.l.b16 %v278
  %v350 = vunpack.c.l.b16 %v279
  %v351 = vunpack.c.l.b16 %v280
  %v352 = vunpack.c.l.b16 %v281
  %v353 = vpack.c.b16 %v322, %v321
  %v354 = vpack.c.b16 %v324, %v323
  %v355 = vpack.c.b16 %v326, %v325
  %v356 = vpack.c.b16 %v328, %v327
  %v357 = vpack.c.b16 %v330, %v329
  %v358 = vpack.c.b16 %v332, %v331
  %v359 = vpack.c.b16 %v334, %v333
  %v360 = vpack.c.b16 %v336, %v335
  %v361 = vpack.c.b16 %v338, %v337
  %v362 = vpack.c.b16 %v340, %v339
  %v363 = vpack.c.b16 %v342, %v341
  %v364 = vpack.c.b16 %v344, %v343
  %v365 = vpack.c.b16 %v346, %v345
  %v366 = vpack.c.b16 %v348, %v347
  %v367 = vpack.c.b16 %v350, %v349
  %v368 = vpack.c.b16 %v352, %v351
  %385 = vmatprep.subr.bf16.mxu0 0
  %386 = vmatpush1.bf16.msra.mxu0 %v360
  %387 = vmatprep.subr.bf16.mxu0 0
  %388 = vmatpush1.bf16.msra.mxu0 %v359
  %389 = vmatprep.subr.bf16.mxu0 0
  %390 = vmatpush1.bf16.msra.mxu0 %v358
  %391 = vmatprep.subr.bf16.mxu0 0
  %392 = vmatpush1.bf16.msra.mxu0 %v357
  %393 = vmatprep.subr.bf16.mxu0 0
  %394 = vmatpush1.bf16.msra.mxu0 %v356
  %395 = vmatprep.subr.bf16.mxu0 0
  %396 = vmatpush1.bf16.msra.mxu0 %v355
  %397 = vmatprep.subr.bf16.mxu0 0
  %398 = vmatpush1.bf16.msra.mxu0 %v354
  %399 = vmatprep.subr.bf16.mxu0 0
  %400 = vmatpush1.bf16.msra.mxu0 %v353
  %401 = vmatprep.subr.bf16.mxu0 0
  %402 = vmatpush2.bf16.msra.mxu0 %v368
  %403 = vmatprep.subr.bf16.mxu0 0
  %404 = vmatpush2.bf16.msra.mxu0 %v367
  %405 = vmatprep.subr.bf16.mxu0 0
  %406 = vmatpush2.bf16.msra.mxu0 %v366
  %407 = vmatprep.subr.bf16.mxu0 0
  %408 = vmatpush2.bf16.msra.mxu0 %v365
  %409 = vmatprep.subr.bf16.mxu0 0
  %410 = vmatpush2.bf16.msra.mxu0 %v364
  %411 = vmatprep.subr.bf16.mxu0 0
  %412 = vmatpush2.bf16.msra.mxu0 %v363
  %413 = vmatprep.subr.bf16.mxu0 0
  %414 = vmatpush2.bf16.msra.mxu0 %v362
  %415 = vmatprep.subr.bf16.mxu0 0
  %416 = vmatpush2.bf16.msra.mxu0 %v361
  %417 = vmatprep.mubr.bf16.mxu0 %v247
  %418 = vmatmul.mubr.bf16.gmra.mxu0 %v246
  %v419 = vpop.f32.mrf.mxu0
  %v420 = vadd.f32 %v287, %v419
  %v421 = vpop.f32.mrf.mxu0
  %v422 = vpop.f32.mrf.mxu0
  %v423 = vadd.f32 %v287, %v422
  %v424 = vpop.f32.mrf.mxu0
  %425 = vmatprep.mubr.bf16.mxu0 %v249
  %426 = vmatmul.mubr.bf16.gmra.mxu0 %v248
  %v427 = vpop.f32.mrf.mxu0
  %v428 = vadd.f32 %v287, %v427
  %v429 = vpop.f32.mrf.mxu0
  %v430 = vpop.f32.mrf.mxu0
  %v431 = vadd.f32 %v287, %v430
  %v432 = vpop.f32.mrf.mxu0
  %433 = vdwg.mxu0
  %v434 = vmax.f32 %v420, 0.0
  %v435 = vmax.f32 %v423, 0.0
  %v436 = vmax.f32 %v428, 0.0
  %v437 = vmax.f32 %v431, 0.0
  %v438 = vadd.f32 %v434, %v21
  %v439 = vadd.f32 %v435, %v22
  %v440 = vadd.f32 %v436, %v23
  %v441 = vadd.f32 %v437, %v24
  %v442 = vmax.f32 %v438, 0.0
  %v443 = vmax.f32 %v439, 0.0
  %v444 = vmax.f32 %v440, 0.0
  %v445 = vmax.f32 %v441, 0.0
  %446 = vst [vmem:[%s5] sm:$0xff] %v442
  %447 = vst [vmem:[%s5 + $0x8] sm:$0xff] %v443
  %448 = vst [vmem:[%s5 + $0x10] sm:$0xff] %v444
  %449 = vst [vmem:[%s5 + $0x18] sm:$0xff] %v445
  // Predicated region
  $region22: #{temporal_conv_net.3} parent=0 // pred_check
    _
  $region23: #{temporal_conv_net.3} parent=0 // pred_check_branch
    %451 = sbr.rel (0) target = $region25
  $region24: #{temporal_conv_net.3} parent=0 // pred_region
    _
  $region25: #{temporal_conv_net.3} parent=0 // pred_fallthru
    _
  // Predicated region
  $region26: #{temporal_conv_net.3} parent=0 // pred_check
    _
  $region27: #{temporal_conv_net.3} parent=0 // pred_check_branch
    %453 = sbr.rel (0) target = $region29
  $region28: #{temporal_conv_net.3} parent=0 // pred_region
    _
  $region29: #{temporal_conv_net.3} parent=0 // pred_fallthru
    _

</llo_original>
